<compile_context>
chip_gen: v7x
topology: tpu7x:2x2x1
jax: 0.10.0
libtpu: 0.0.40
codegen_flags: <defaults>
</compile_context>

<pallas_src>
import jax
import jax.numpy as jnp
from jax import lax
from jax.experimental import pallas as pl
from jax.experimental.pallas import tpu as pltpu


def ada_layer_norm_kernel(x_ref, g_ref, b_ref, o_ref):
    """LayerNorm(no affine) + modulate for one row tile.

    x_ref : (TILE_N, D)  rows to normalize (native dtype, upcast inside)
    g_ref : (1, D)       precomputed (1 + scale), f32, resident across grid
    b_ref : (1, D)       precomputed shift,       f32, resident across grid
    o_ref : (TILE_N, D)  output tile (native dtype)
    """
    eps = 1e-5
    x = x_ref[...].astype(jnp.float32)                      # (TILE_N, D)
    inv_d = 1.0 / x.shape[-1]

    # Single-pass statistics: sum(x) and sum(x*x); var = E[x^2] - mean^2.
    # f32 accumulation keeps this stable enough for LayerNorm.
    s1 = jnp.sum(x, axis=-1, keepdims=True)
    s2 = jnp.sum(x * x, axis=-1, keepdims=True)
    mean = s1 * inv_d
    var = s2 * inv_d - mean * mean

    xn = (x - mean) * lax.rsqrt(var + eps)                  # EUP rsqrt
    o_ref[...] = (xn * g_ref[...] + b_ref[...]).astype(o_ref.dtype)


def _pick_tile_n(n_rows, d, itemsize, vmem_budget_bytes=8 << 20):
    """Row tile: multiple of 8 sublanes, sized so the double-buffered input
    and output tiles plus the f32 working copy stay well inside VMEM."""
    # bytes per row: in-tile (native, x2 buffers) + out-tile (native, x2) + f32 work
    bytes_per_row = d * (4 * itemsize + 4)
    tile = max(8, vmem_budget_bytes // max(bytes_per_row, 1))
    tile = min(tile, 1024)                 # per-step overhead already amortized
    tile = (tile // 8) * 8                 # sublane multiple
    if n_rows <= tile:
        return n_rows                      # full-extent block is always legal
    return max(8, tile)


def ada_layer_norm(x, timestep, emb_table, linear_w, linear_b):
    """x: (B, S, D); timestep: scalar int; torch-style params:
       emb_table: (num_embeddings, D), linear_w: (2D, D), linear_b: (2D,)."""
    B, S, D = x.shape
    N = B * S
    x2 = x.reshape(N, D)

    # ---- Conditioning path hoisted to plain XLA (tiny, not worth the MXU) ----
    e = emb_table[timestep].astype(jnp.float32)             # (D,)
    e = e * jax.nn.sigmoid(e)                               # SiLU
    # Pre-split W (out, in) -> two (D, D) blocks; contract on the 'in' axis
    # directly so no transpose copy and no lane-offset slice is materialized.
    scale = linear_w[:D].astype(jnp.float32) @ e + linear_b[:D].astype(jnp.float32)
    shift = linear_w[D:].astype(jnp.float32) @ e + linear_b[D:].astype(jnp.float32)
    one_plus_scale = (1.0 + scale).reshape(1, D)
    shift2 = shift.reshape(1, D)

    # ---- Row tiling (multiple of 8 sublanes; adaptive to VMEM budget) ----
    tile_n = _pick_tile_n(N, D, jnp.dtype(x.dtype).itemsize)
    grid = (pl.cdiv(N, tile_n),)

    out = pl.pallas_call(
        ada_layer_norm_kernel,
        out_shape=jax.ShapeDtypeStruct((N, D), x.dtype),
        grid_spec=pltpu.PrefetchScalarGridSpec(
            num_scalar_prefetch=0,
            grid=grid,
            in_specs=[
                pl.BlockSpec((tile_n, D), lambda i: (i, 0)),   # streamed rows
                pl.BlockSpec((1, D), lambda i: (0, 0)),        # 1+scale (resident)
                pl.BlockSpec((1, D), lambda i: (0, 0)),        # shift   (resident)
            ],
            out_specs=pl.BlockSpec((tile_n, D), lambda i: (i, 0)),
        ),
        compiler_params=pltpu.CompilerParams(
            dimension_semantics=("parallel",),   # shard rows across v7x's 2 TCs
            vmem_limit_bytes=64 << 20,           # headroom above low defaults
        ),
    )(x2, one_plus_scale, shift2)
    return out.reshape(B, S, D)


def _reference(x, timestep, emb_table, linear_w, linear_b):
    D = x.shape[-1]
    e = emb_table[timestep]
    e = e * jax.nn.sigmoid(e)
    proj = e @ linear_w.T + linear_b
    scale, shift = proj[:D], proj[D:]
    mean = x.mean(-1, keepdims=True)
    var = ((x - mean) ** 2).mean(-1, keepdims=True)
    xn = (x - mean) / jnp.sqrt(var + 1e-5)
    return xn * (1.0 + scale) + shift


if __name__ == "__main__":
    embedding_dim = 32
    num_embeddings = 8
    B, S = 2, 8

    key = jax.random.PRNGKey(0)
    k1, k2, k3, k4 = jax.random.split(key, 4)

    # Deterministic synthetic parameters (shapes from the module __init__).
    emb_table = jax.random.normal(k1, (num_embeddings, embedding_dim), jnp.float32)
    linear_w = 0.02 * jax.random.normal(k2, (2 * embedding_dim, embedding_dim), jnp.float32)
    linear_b = 0.02 * jax.random.normal(k3, (2 * embedding_dim,), jnp.float32)

    x = jax.random.normal(k4, (B, S, embedding_dim), jnp.float32)
    timestep = jnp.int32(3)

    out = ada_layer_norm(x, timestep, emb_table, linear_w, linear_b)
    out = jax.block_until_ready(out)

    ref = _reference(x, timestep, emb_table, linear_w, linear_b)
    assert out.shape == x.shape
    assert jnp.allclose(out, ref, atol=1e-4, rtol=1e-4)

    print("KERNEL_OK")
</pallas_src>

<mosaic_0001>
module attributes {stable_mosaic.version = 11 : i64} {
  func.func @ada_layer_norm_kernel(%arg0: i32, %arg1: memref<16x32xf32, #tpu.memory_space<vmem>>, %arg2: memref<1x32xf32, #tpu.memory_space<vmem>>, %arg3: memref<1x32xf32, #tpu.memory_space<vmem>>, %arg4: memref<16x32xf32, #tpu.memory_space<vmem>>) attributes {dimension_semantics = [#tpu.dimension_semantics<parallel>], iteration_bounds = array<i64: 1>, scalar_prefetch = 0 : i64, scratch_operands = 0 : i64, tpu.core_type = #tpu.core_type<tc>, window_params = [{transform_indices = @transform_0, window_bounds = array<i64: 16, 32>}, {pipeline_mode = #tpu.pipeline_mode<synchronous>, transform_indices = @transform_1, window_bounds = array<i64: 1, 32>}, {pipeline_mode = #tpu.pipeline_mode<synchronous>, transform_indices = @transform_2, window_bounds = array<i64: 1, 32>}, {transform_indices = @transform_3, window_bounds = array<i64: 16, 32>}]} {
    %c0 = arith.constant 0 : index
    %c0_0 = arith.constant 0 : index
    %0 = vector.load %arg1[%c0, %c0_0] : memref<16x32xf32, #tpu.memory_space<vmem>>, vector<16x32xf32>
    %cst = arith.constant dense<0.000000e+00> : vector<16xf32>
    %1 = vector.multi_reduction <add>, %0, %cst [1] : vector<16x32xf32> to vector<16xf32>
    %2 = vector.shape_cast %1 : vector<16xf32> to vector<16x1xf32>
    %3 = arith.mulf %0, %0 : vector<16x32xf32>
    %cst_1 = arith.constant dense<0.000000e+00> : vector<16xf32>
    %4 = vector.multi_reduction <add>, %3, %cst_1 [1] : vector<16x32xf32> to vector<16xf32>
    %5 = vector.shape_cast %4 : vector<16xf32> to vector<16x1xf32>
    %cst_2 = arith.constant 3.125000e-02 : f32
    %6 = vector.broadcast %cst_2 : f32 to vector<16x1xf32>
    %7 = arith.mulf %2, %6 : vector<16x1xf32>
    %cst_3 = arith.constant 3.125000e-02 : f32
    %8 = vector.broadcast %cst_3 : f32 to vector<16x1xf32>
    %9 = arith.mulf %5, %8 : vector<16x1xf32>
    %10 = arith.mulf %7, %7 : vector<16x1xf32>
    %11 = arith.subf %9, %10 : vector<16x1xf32>
    %12 = vector.broadcast %7 : vector<16x1xf32> to vector<16x32xf32>
    %13 = arith.subf %0, %12 : vector<16x32xf32>
    %cst_4 = arith.constant 9.99999974E-6 : f32
    %14 = vector.broadcast %cst_4 : f32 to vector<16x1xf32>
    %15 = arith.addf %11, %14 : vector<16x1xf32>
    %16 = math.rsqrt %15 : vector<16x1xf32>
    %17 = vector.broadcast %16 : vector<16x1xf32> to vector<16x32xf32>
    %18 = arith.mulf %13, %17 : vector<16x32xf32>
    %c0_5 = arith.constant 0 : index
    %c0_6 = arith.constant 0 : index
    %19 = vector.load %arg2[%c0_5, %c0_6] : memref<1x32xf32, #tpu.memory_space<vmem>>, vector<1x32xf32>
    %20 = vector.broadcast %19 : vector<1x32xf32> to vector<16x32xf32>
    %21 = arith.mulf %18, %20 : vector<16x32xf32>
    %c0_7 = arith.constant 0 : index
    %c0_8 = arith.constant 0 : index
    %22 = vector.load %arg3[%c0_7, %c0_8] : memref<1x32xf32, #tpu.memory_space<vmem>>, vector<1x32xf32>
    %23 = vector.broadcast %22 : vector<1x32xf32> to vector<16x32xf32>
    %24 = arith.addf %21, %23 : vector<16x32xf32>
    %c0_9 = arith.constant 0 : index
    %c0_10 = arith.constant 0 : index
    %25 = vector.load %arg4[%c0_9, %c0_10] : memref<16x32xf32, #tpu.memory_space<vmem>>, vector<16x32xf32>
    tpu.vector_store %arg4[%c0_9, %c0_10], %24 {strides = array<i32>} : memref<16x32xf32, #tpu.memory_space<vmem>>, vector<16x32xf32>,
    return
  }
  func.func @transform_0(%arg0: i32) -> (i32, i32) {
    %c0_i32 = arith.constant 0 : i32
    %c0_i32_0 = arith.constant 0 : i32
    return %arg0, %c0_i32 : i32, i32
  }
  func.func @transform_1(%arg0: i32) -> (i32, i32) {
    %c0_i32 = arith.constant 0 : i32
    %c0_i32_0 = arith.constant 0 : i32
    %c0_i32_1 = arith.constant 0 : i32
    return %c0_i32, %c0_i32_0 : i32, i32
  }
  func.func @transform_2(%arg0: i32) -> (i32, i32) {
    %c0_i32 = arith.constant 0 : i32
    %c0_i32_0 = arith.constant 0 : i32
    %c0_i32_1 = arith.constant 0 : i32
    return %c0_i32, %c0_i32_0 : i32, i32
  }
  func.func @transform_3(%arg0: i32) -> (i32, i32) {
    %c0_i32 = arith.constant 0 : i32
    %c0_i32_0 = arith.constant 0 : i32
    return %arg0, %c0_i32 : i32, i32
  }
}

</mosaic_0001>

<llo_original>
// kernel: tpu_custom_call.1
$region0: #{tpu_custom_call.1}
  #allocation0 [shape = 'u32[]', space=smem, size = 0x4, offset = 0x4, fixed_abs, tag = 'smem constant byte address 0x4 - core index']
  #allocation1 [shape = 'u32[144,128]{1,0:T(1,128)}', space=vmem, size = 0x12000, scoped, tag = 'internal scratch']
  %s0 = inlined_call_operand.hbm [shape: f32[16,32], index: 0, kind: input, shape index: {}]
  %s1 = inlined_call_operand.hbm [shape: f32[1,32], index: 1, kind: input, shape index: {}]
  %s2 = inlined_call_operand.hbm [shape: f32[1,32], index: 2, kind: input, shape index: {}]
  %s3 = inlined_call_operand.hbm [shape: f32[16,32], index: 3, kind: output, shape index: {}]
  %s4 = sld [smem:[#allocation0]]
  $region34: #{tpu_custom_call.1} parent=0
    _
  %s6 = ssub.s32 1, %s4
  %s7 = scalar_select 0, %s6, %s4
  $region1: #{tpu_custom_call.1} parent=0
    #allocation2 [shape = 'u8[8192]{0}', space=vmem, size = 0x2000, scoped, tag = 'input window, operand 0, single buffered']
    #allocation3 [shape = 's32[1]{0}', space=sflag, size = 0x4, scoped, tag = 'scoped memory for tpu_custom_call.1']
    #allocation4 [shape = 's32[1]{0}', space=sflag, size = 0x4, scoped, tag = 'scoped memory for tpu_custom_call.1']
    #allocation5 [shape = 'u8[512]{0}', space=vmem, size = 0x400, scoped, tag = 'input window, operand 1, single buffered']
    #allocation6 [shape = 's32[1]{0}', space=sflag, size = 0x4, scoped, tag = 'scoped memory for tpu_custom_call.1']
    #allocation7 [shape = 'u8[512]{0}', space=vmem, size = 0x400, scoped, tag = 'input window, operand 2, single buffered']
    #allocation8 [shape = 'u8[8192]{0}', space=vmem, size = 0x2000, scoped, tag = 'output window, operand 0, single buffered']
    %8 = vsyncpa [#allocation3], 0
    %9 = vsyncpa [#allocation6], 0
    %10 = vsyncpa [#allocation4], 0
    // Predicated region
    $region2: #{tpu_custom_call.1} parent=1 // pred_check
      _
    $region3: #{tpu_custom_call.1} parent=1 // pred_check_branch
      %12 = sbr.rel (0) target = $region5
    $region4: #{tpu_custom_call.1} parent=1 // pred_region
      %s14 = ssub.s32 256, 256
      %15 = vsyncadd [#allocation3], %s14
      %s16 = sshll.u32 [#allocation2], 4
      %s17 = int_to_ptr.vmem [resolvable:$true] %s16
      %22 = dma.hbm_to_vmem [thread:$0]  %s0, 256, %s17, [#allocation3], 128, 128, 8
    $region5: #{tpu_custom_call.1} parent=1 // pred_fallthru
      _
    // Predicated region
    $region6: #{tpu_custom_call.1} parent=1 // pred_check
      _
    $region7: #{tpu_custom_call.1} parent=1 // pred_check_branch
      %24 = sbr.rel (0) target = $region9
    $region8: #{tpu_custom_call.1} parent=1 // pred_region
      %s26 = ssub.s32 16, 16
      %27 = vsyncadd [#allocation6], %s26
      %s29 = sshll.u32 [#allocation5], 4
      %s30 = int_to_ptr.vmem [resolvable:$true] %s29
      %32 = dma.hbm_to_vmem [thread:$0]  %s1, 16, %s30, [#allocation6]
    $region9: #{tpu_custom_call.1} parent=1 // pred_fallthru
      _
    // Predicated region
    $region10: #{tpu_custom_call.1} parent=1 // pred_check
      _
    $region11: #{tpu_custom_call.1} parent=1 // pred_check_branch
      %34 = sbr.rel (0) target = $region13
    $region12: #{tpu_custom_call.1} parent=1 // pred_region
      %s36 = ssub.s32 16, 16
      %37 = vsyncadd [#allocation6], %s36
      %s39 = sshll.u32 [#allocation7], 4
      %s40 = int_to_ptr.vmem [resolvable:$true] %s39
      %42 = dma.hbm_to_vmem [thread:$0]  %s2, 16, %s40, [#allocation6]
    $region13: #{tpu_custom_call.1} parent=1 // pred_fallthru
      _
    // Predicated region
    $region14: #{tpu_custom_call.1} parent=1 // pred_check
      _
    $region15: #{tpu_custom_call.1} parent=1 // pred_check_branch
      %44 = sbr.rel (0) target = $region17
    $region16: #{tpu_custom_call.1} parent=1 // pred_region
      %45 = dma.done [#allocation3], 256
    $region17: #{tpu_custom_call.1} parent=1 // pred_fallthru
      _
    // Predicated region
    $region18: #{tpu_custom_call.1} parent=1 // pred_check
      _
    $region19: #{tpu_custom_call.1} parent=1 // pred_check_branch
      %47 = sbr.rel (0) target = $region21
    $region20: #{tpu_custom_call.1} parent=1 // pred_region
      %48 = dma.done [#allocation6], 16
    $region21: #{tpu_custom_call.1} parent=1 // pred_fallthru
      _
    // Predicated region
    $region22: #{tpu_custom_call.1} parent=1 // pred_check
      _
    $region23: #{tpu_custom_call.1} parent=1 // pred_check_branch
      %50 = sbr.rel (0) target = $region25
    $region24: #{tpu_custom_call.1} parent=1 // pred_region
      %51 = dma.done [#allocation6], 16
    $region25: #{tpu_custom_call.1} parent=1 // pred_fallthru
      _
    %v52 = vld [vmem:[#allocation2] sm:$0xff]
    %v53 = vld [vmem:[#allocation2 + $0x8] sm:$0xff]
    %vm54 = vcmask 261120
    %v55 = vsel %vm54, %v52, 0.0
    %56 = vadd.xlane.f32.xlu0 %v55
    %v57 = vpop.xlane.xlu0 %56
    %v58 = vsel %vm54, %v53, 0.0
    %59 = vadd.xlane.f32.xlu0 %v58
    %v60 = vpop.xlane.xlu0 %59
    %v61 = vmul.f32 %v52, %v52
    %v62 = vmul.f32 %v53, %v53
    %v63 = vsel %vm54, %v61, 0.0
    %64 = vadd.xlane.f32.xlu0 %v63
    %v65 = vpop.xlane.xlu0 %64
    %v66 = vsel %vm54, %v62, 0.0
    %67 = vadd.xlane.f32.xlu0 %v66
    %v68 = vpop.xlane.xlu0 %67
    %v69 = vmul.f32 %v57, 0.03125
    %v70 = vmul.f32 %v60, 0.03125
    %v71 = vmul.f32 %v65, 0.03125
    %v72 = vmul.f32 %v68, 0.03125
    %v73 = vmul.f32 %v69, %v69
    %v74 = vmul.f32 %v70, %v70
    %v75 = vsub.f32 %v71, %v73
    %v76 = vsub.f32 %v72, %v74
    %v77 = vsub.f32 %v52, %v69
    %v78 = vsub.f32 %v53, %v70
    %v79 = vadd.f32 %v75, 1e-05
    %v80 = vadd.f32 %v76, 1e-05
    %v81 = vrsqrt.pop %v79
    %v82 = vrsqrt.pop %v80
    %v83 = vmul.f32 %v77, %v81
    %v84 = vmul.f32 %v78, %v82
    %v85 = vld [vmem:[#allocation5] sm:$0x1]
    %v87 = vlaneseq
    %v88 = vshrl.u32 %v87, 7
    %v89 = vsub.s32 0, %v88
    %v90 = vrot.slane %v85, %v89
    %v92 = vmul.f32 %v83, %v90
    %v93 = vmul.f32 %v84, %v90
    %v94 = vld [vmem:[#allocation7] sm:$0x1]
    %v96 = vlaneseq
    %v97 = vshrl.u32 %v96, 7
    %v98 = vsub.s32 0, %v97
    %v99 = vrot.slane %v94, %v98
    %v101 = vadd.f32 %v92, %v99
    %v102 = vadd.f32 %v93, %v99
    %103 = vst.msk [vmem:[#allocation8] sm:$0xff] %vm54, %v101
    %104 = vst.msk [vmem:[#allocation8 + $0x8] sm:$0xff] %vm54, %v102
    // Predicated region
    $region26: #{tpu_custom_call.1} parent=1 // pred_check
      _
    $region27: #{tpu_custom_call.1} parent=1 // pred_check_branch
      %106 = sbr.rel (0) target = $region29
    $region28: #{tpu_custom_call.1} parent=1 // pred_region
      %s108 = ssub.s32 256, 256
      %109 = vsyncadd [#allocation4], %s108
      %s110 = sshll.u32 [#allocation8], 4
      %s111 = int_to_ptr.vmem [resolvable:$true] %s110
      %116 = dma.vmem_to_hbm [thread:$0]  %s111, 256, %s3, [#allocation4], 128, 128, 8
    $region29: #{tpu_custom_call.1} parent=1 // pred_fallthru
      _
    // Predicated region
    $region30: #{tpu_custom_call.1} parent=1 // pred_check
      _
    $region31: #{tpu_custom_call.1} parent=1 // pred_check_branch
      %118 = sbr.rel (0) target = $region33
    $region32: #{tpu_custom_call.1} parent=1 // pred_region
      %119 = dma.done [#allocation4], 256
    $region33: #{tpu_custom_call.1} parent=1 // pred_fallthru
      _
    %120 = vsyncpa [#allocation3], 1
    %121 = vsyncpa [#allocation6], 1
    %122 = vsyncpa [#allocation4], 1

</llo_original>
